<compile_context>
chip_gen: v7x
topology: tpu7x:2x2x1
jax: 0.10.0
libtpu: 0.0.40
codegen_flags: <defaults>
</compile_context>

<pallas_src>
import functools

import jax
import jax.numpy as jnp
from jax import lax
from jax.experimental import pallas as pl
from jax.experimental.pallas import tpu as pltpu

NO = 6  # (x, y, w, h, obj, cls) per anchor


def _yolo_kernel(aux_ref, p_ref, io_ref, *, stride):
    """Decode one lane-dense tile of YOLO predictions.

    aux_ref : VMEM (na, NO, s_tile)  precomputed planes:
                rows 0,1 -> grid x / grid y (cell units)
                rows 2,3 -> anchor w / h in pixels (stride already folded in)
                rows 4,5 -> 0 (unused)
    p_ref   : VMEM (bs, na, NO, s_tile) raw network output
    io_ref  : VMEM (bs, na, NO, s_tile) decoded output
    """
    x = p_ref[...]                       # one dense load
    aux = aux_ref[...]                   # broadcasts over the batch dim

    ch = lax.broadcasted_iota(jnp.int32, x.shape, 2)  # channel index (NO axis)

    sig = jax.nn.sigmoid(x)
    xy = (sig + aux) * stride            # valid on channels 0,1
    wh = jnp.exp(x) * aux                # valid on channels 2,3

    out = jnp.where(ch < 2, xy, jnp.where(ch < 4, wh, sig))
    io_ref[...] = out                    # one dense store


def _round_up(v, m):
    return (v + m - 1) // m * m


def _choose_spatial_tile(bs, na, s, budget_bytes=6 << 20):
    """Largest lane-dense spatial tile under a per-buffer VMEM budget.

    Budget keeps (in + out) x double-buffering well under v7x's 32 MiB scoped
    VMEM while using a single step for typical (small) YOLO maps.
    """
    lane = 128
    per_lane_bytes = bs * na * 8 * 4     # NO padded to 8 sublanes, f32
    if per_lane_bytes * _round_up(s, lane) <= budget_bytes:
        return s, 1                      # whole map in one block
    max_lanes = max(lane, (budget_bytes // per_lane_bytes) // lane * lane)
    return max_lanes, pl.cdiv(s, max_lanes)


def _build_aux(anchors, na, ny, nx, stride, dtype=jnp.float32):
    """(na, NO, ny*nx) aux planes: grid xy, anchor wh (pixels), zeros."""
    s = ny * nx
    gy, gx = jnp.meshgrid(jnp.arange(ny), jnp.arange(nx), indexing="ij")
    gx = gx.reshape(1, 1, s).astype(dtype)
    gy = gy.reshape(1, 1, s).astype(dtype)
    grid_rows = jnp.broadcast_to(jnp.concatenate([gx, gy], axis=1), (na, 2, s))
    # Same op order as torch: (anchors / stride) then * stride.
    anchors_px = ((anchors / stride) * stride).astype(dtype)          # (na, 2)
    anchor_rows = jnp.broadcast_to(anchors_px[:, :, None], (na, 2, s))
    zero_rows = jnp.zeros((na, 2, s), dtype)
    return jnp.concatenate([grid_rows, anchor_rows, zero_rows], axis=1)


def yolo_layer_forward(p, anchors, img_size, *, torch_layout=True):
    """Pallas equivalent of YOLOLayer.forward.

    p        : (bs, na*NO, ny, nx) float32, NCHW
    anchors  : (na, 2) float32 (input-image pixel units)
    img_size : tuple of ints, e.g. (256, 256)

    torch_layout=True  -> returns (io, p_perm) exactly like the PyTorch module:
                            io     : (bs, na*ny*nx, NO)
                            p_perm : (bs, na, ny, nx, NO)
    torch_layout=False -> returns channel-first (io_flat, p_flat), both
                          (bs, na, NO, ny*nx); skips the layout-glue transposes
                          (saves ~2-3x HBM traffic for TPU-side consumers).
    """
    bs, c, ny, nx = p.shape
    na = anchors.shape[0]
    assert c == na * NO, "channel dim must equal na * 6"

    stride = float(max(img_size)) / float(max(nx, ny))
    s = ny * nx

    aux = _build_aux(anchors, na, ny, nx, stride)      # (na, NO, s), tiny
    p_flat = p.reshape(bs, na, NO, s)                  # lane-dense spatial axis

    s_tile, n_s = _choose_spatial_tile(bs, na, s)

    io_flat = pl.pallas_call(
        functools.partial(_yolo_kernel, stride=stride),
        out_shape=jax.ShapeDtypeStruct((bs, na, NO, s), jnp.float32),
        grid=(n_s,),
        in_specs=[
            pl.BlockSpec((na, NO, s_tile), lambda j: (0, 0, j)),
            pl.BlockSpec((bs, na, NO, s_tile), lambda j: (0, 0, 0, j)),
        ],
        out_specs=pl.BlockSpec((bs, na, NO, s_tile), lambda j: (0, 0, 0, j)),
        compiler_params=pltpu.CompilerParams(
            dimension_semantics=("parallel",)),
    )(aux, p_flat)

    if not torch_layout:
        return io_flat, p_flat

    # PyTorch-parity layout glue (extra HBM pass); only pay for it when the
    # torch output layout is actually consumed.
    p_perm = jnp.transpose(p_flat.reshape(bs, na, NO, ny, nx), (0, 1, 3, 4, 2))
    io = jnp.transpose(io_flat, (0, 1, 3, 2)).reshape(bs, na * s, NO)
    return io, p_perm


def _ref_forward(p, anchors, img_size):
    """Pure-JAX reference mirroring the PyTorch semantics exactly."""
    bs, c, ny, nx = p.shape
    na = anchors.shape[0]
    stride = float(max(img_size)) / float(max(nx, ny))
    anchor_vec = anchors / stride
    pv = jnp.transpose(p.reshape(bs, na, NO, ny, nx), (0, 1, 3, 4, 2))
    gy, gx = jnp.meshgrid(jnp.arange(ny), jnp.arange(nx), indexing="ij")
    grid_xy = jnp.stack((gx, gy), -1).astype(p.dtype)[None, None]
    xy = (jax.nn.sigmoid(pv[..., :2]) + grid_xy) * stride
    wh = jnp.exp(pv[..., 2:4]) * anchor_vec.reshape(1, na, 1, 1, 2) * stride
    rest = jax.nn.sigmoid(pv[..., 4:])
    io = jnp.concatenate([xy, wh, rest], axis=-1)
    return io.reshape(bs, -1, NO), pv


if __name__ == "__main__":
    key = jax.random.PRNGKey(0)

    anchors = jnp.array([[10.0, 14.0], [23.0, 27.0], [37.0, 58.0]],
                        dtype=jnp.float32)
    bs, na = 2, 3

    # Test 1: 16x16 map (ny*nx = 256, a multiple of 128 -> fully lane-dense).
    ny, nx = 16, 16
    img_size = (256, 256)
    p = jax.random.normal(key, (bs, na * NO, ny, nx), dtype=jnp.float32)

    io, p_perm = yolo_layer_forward(p, anchors, img_size)
    io, p_perm = jax.block_until_ready((io, p_perm))

    io_ref, p_ref_out = _ref_forward(p, anchors, img_size)
    assert io.shape == (bs, na * ny * nx, NO)
    assert p_perm.shape == (bs, na, ny, nx, NO)
    assert jnp.allclose(io, io_ref, rtol=1e-5, atol=1e-4)
    assert jnp.allclose(p_perm, p_ref_out, rtol=1e-6, atol=1e-6)

    # Test 2: classic 13x13 map (ny*nx = 169, NOT a multiple of 128) to cover
    # the masked-tail lane path flagged in the review.
    ny2 = nx2 = 13
    img_size2 = (416, 416)
    p2 = jax.random.normal(jax.random.PRNGKey(1), (bs, na * NO, ny2, nx2),
                           dtype=jnp.float32)
    io2, p_perm2 = yolo_layer_forward(p2, anchors, img_size2)
    io2, p_perm2 = jax.block_until_ready((io2, p_perm2))
    io2_ref, p2_ref_out = _ref_forward(p2, anchors, img_size2)
    assert jnp.allclose(io2, io2_ref, rtol=1e-5, atol=1e-4)
    assert jnp.allclose(p_perm2, p2_ref_out, rtol=1e-6, atol=1e-6)

    # Fast path (no torch-layout glue) also runs and matches.
    io_flat, p_flat = yolo_layer_forward(p, anchors, img_size,
                                         torch_layout=False)
    io_flat, p_flat = jax.block_until_ready((io_flat, p_flat))
    assert io_flat.shape == (bs, na, NO, ny * nx)
    io_from_flat = jnp.transpose(io_flat, (0, 1, 3, 2)).reshape(bs, -1, NO)
    assert jnp.allclose(io_from_flat, io_ref, rtol=1e-5, atol=1e-4)

    print("KERNEL_OK")
</pallas_src>

<mosaic_0001>
module attributes {stable_mosaic.version = 11 : i64} {
  func.func @_yolo_kernel(%arg0: i32, %arg1: memref<3x6x256xf32, #tpu.memory_space<vmem>>, %arg2: memref<2x3x6x256xf32, #tpu.memory_space<vmem>>, %arg3: memref<2x3x6x256xf32, #tpu.memory_space<vmem>>) attributes {dimension_semantics = [#tpu.dimension_semantics<parallel>], iteration_bounds = array<i64: 1>, scalar_prefetch = 0 : i64, scratch_operands = 0 : i64, tpu.core_type = #tpu.core_type<tc>, window_params = [{transform_indices = @transform_0, window_bounds = array<i64: 3, 6, 256>}, {transform_indices = @transform_1, window_bounds = array<i64: 2, 3, 6, 256>}, {transform_indices = @transform_2, window_bounds = array<i64: 2, 3, 6, 256>}]} {
    %c0 = arith.constant 0 : index
    %c0_0 = arith.constant 0 : index
    %c0_1 = arith.constant 0 : index
    %c0_2 = arith.constant 0 : index
    %0 = vector.load %arg2[%c0, %c0_0, %c0_1, %c0_2] : memref<2x3x6x256xf32, #tpu.memory_space<vmem>>, vector<2x3x6x256xf32>
    %c0_3 = arith.constant 0 : index
    %c0_4 = arith.constant 0 : index
    %c0_5 = arith.constant 0 : index
    %1 = vector.load %arg1[%c0_3, %c0_4, %c0_5] : memref<3x6x256xf32, #tpu.memory_space<vmem>>, vector<3x6x256xf32>
    %2 = tpu.iota {dimensions = array<i32: 2>} : vector<2x3x6x256xi32>
    %3 = arith.negf %0 : vector<2x3x6x256xf32>
    %4 = math.exp %3 : vector<2x3x6x256xf32>
    %cst = arith.constant 1.000000e+00 : f32
    %5 = vector.broadcast %cst : f32 to vector<2x3x6x256xf32>
    %6 = arith.addf %5, %4 : vector<2x3x6x256xf32>
    %7 = arith.divf %5, %6 : vector<2x3x6x256xf32>
    %8 = vector.shape_cast %1 : vector<3x6x256xf32> to vector<1x3x6x256xf32>
    %9 = vector.broadcast %8 : vector<1x3x6x256xf32> to vector<2x3x6x256xf32>
    %10 = arith.addf %7, %9 : vector<2x3x6x256xf32>
    %cst_6 = arith.constant 1.600000e+01 : f32
    %11 = vector.broadcast %cst_6 : f32 to vector<2x3x6x256xf32>
    %12 = arith.mulf %10, %11 : vector<2x3x6x256xf32>
    %13 = math.exp %0 : vector<2x3x6x256xf32>
    %14 = vector.shape_cast %1 : vector<3x6x256xf32> to vector<1x3x6x256xf32>
    %15 = vector.broadcast %14 : vector<1x3x6x256xf32> to vector<2x3x6x256xf32>
    %16 = arith.mulf %13, %15 : vector<2x3x6x256xf32>
    %c2_i32 = arith.constant 2 : i32
    %17 = vector.broadcast %c2_i32 : i32 to vector<2x3x6x256xi32>
    %18 = arith.cmpi slt, %2, %17 : vector<2x3x6x256xi32>
    %c4_i32 = arith.constant 4 : i32
    %19 = vector.broadcast %c4_i32 : i32 to vector<2x3x6x256xi32>
    %20 = arith.cmpi slt, %2, %19 : vector<2x3x6x256xi32>
    %21 = arith.select %20, %16, %7 : vector<2x3x6x256xi1>, vector<2x3x6x256xf32>
    %22 = arith.select %18, %12, %21 : vector<2x3x6x256xi1>, vector<2x3x6x256xf32>
    %c0_7 = arith.constant 0 : index
    %c0_8 = arith.constant 0 : index
    %c0_9 = arith.constant 0 : index
    %c0_10 = arith.constant 0 : index
    %23 = vector.load %arg3[%c0_7, %c0_8, %c0_9, %c0_10] : memref<2x3x6x256xf32, #tpu.memory_space<vmem>>, vector<2x3x6x256xf32>
    tpu.vector_store %arg3[%c0_7, %c0_8, %c0_9, %c0_10], %22 {strides = array<i32>} : memref<2x3x6x256xf32, #tpu.memory_space<vmem>>, vector<2x3x6x256xf32>,
    return
  }
  func.func @transform_0(%arg0: i32) -> (i32, i32, i32) {
    %c0_i32 = arith.constant 0 : i32
    %c0_i32_0 = arith.constant 0 : i32
    %c0_i32_1 = arith.constant 0 : i32
    return %c0_i32, %c0_i32_0, %arg0 : i32, i32, i32
  }
  func.func @transform_1(%arg0: i32) -> (i32, i32, i32, i32) {
    %c0_i32 = arith.constant 0 : i32
    %c0_i32_0 = arith.constant 0 : i32
    %c0_i32_1 = arith.constant 0 : i32
    %c0_i32_2 = arith.constant 0 : i32
    return %c0_i32, %c0_i32_0, %c0_i32_1, %arg0 : i32, i32, i32, i32
  }
  func.func @transform_2(%arg0: i32) -> (i32, i32, i32, i32) {
    %c0_i32 = arith.constant 0 : i32
    %c0_i32_0 = arith.constant 0 : i32
    %c0_i32_1 = arith.constant 0 : i32
    %c0_i32_2 = arith.constant 0 : i32
    return %c0_i32, %c0_i32_0, %c0_i32_1, %arg0 : i32, i32, i32, i32
  }
}

</mosaic_0001>

<llo_original>
// kernel: tpu_custom_call.1
$region0: #{tpu_custom_call.1}
  #allocation0 [shape = 'u32[]', space=smem, size = 0x4, offset = 0x4, fixed_abs, tag = 'smem constant byte address 0x4 - core index']
  #allocation1 [shape = 'u32[144,128]{1,0:T(1,128)}', space=vmem, size = 0x12000, scoped, tag = 'internal scratch']
  %s0 = inlined_call_operand.vmem [shape: f32[3,6,256], index: 0, kind: input, shape index: {}]
  %s1 = inlined_call_operand.vmem [shape: f32[2,3,6,256], index: 1, kind: input, shape index: {}]
  %s2 = inlined_call_operand.vmem [shape: f32[2,3,6,256], index: 2, kind: output, shape index: {}]
  %s3 = sld [smem:[#allocation0]]
  $region18: #{tpu_custom_call.1} parent=0
    _
  %s5 = ssub.s32 1, %s3
  %s6 = scalar_select 0, %s5, %s3
  // Predicated region
  $region2: #{tpu_custom_call.1} parent=0 // pred_check
    _
  $region3: #{tpu_custom_call.1} parent=0 // pred_check_branch
    %8 = sbr.rel (0) target = $region5
  $region4: #{tpu_custom_call.1} parent=0 // pred_region
    _
  $region5: #{tpu_custom_call.1} parent=0 // pred_fallthru
    _
  // Predicated region
  $region6: #{tpu_custom_call.1} parent=0 // pred_check
    _
  $region7: #{tpu_custom_call.1} parent=0 // pred_check_branch
    %10 = sbr.rel (0) target = $region9
  $region8: #{tpu_custom_call.1} parent=0 // pred_region
    _
  $region9: #{tpu_custom_call.1} parent=0 // pred_fallthru
    _
  %v11 = vld [vmem:[%s1] sm:$0x3f]
  %v12 = vld [vmem:[%s1 + $0x8] sm:$0x3f]
  %v13 = vld [vmem:[%s1 + $0x10] sm:$0x3f]
  %v14 = vld [vmem:[%s1 + $0x18] sm:$0x3f]
  %v15 = vld [vmem:[%s1 + $0x20] sm:$0x3f]
  %v16 = vld [vmem:[%s1 + $0x28] sm:$0x3f]
  %v17 = vld [vmem:[%s1 + $0x30] sm:$0x3f]
  %v18 = vld [vmem:[%s1 + $0x38] sm:$0x3f]
  %v19 = vld [vmem:[%s1 + $0x40] sm:$0x3f]
  %v20 = vld [vmem:[%s1 + $0x48] sm:$0x3f]
  %v21 = vld [vmem:[%s1 + $0x50] sm:$0x3f]
  %v22 = vld [vmem:[%s1 + $0x58] sm:$0x3f]
  %v23 = vld [vmem:[%s0] sm:$0x3f]
  %v24 = vld [vmem:[%s0 + $0x8] sm:$0x3f]
  %v25 = vld [vmem:[%s0 + $0x10] sm:$0x3f]
  %v26 = vld [vmem:[%s0 + $0x18] sm:$0x3f]
  %v27 = vld [vmem:[%s0 + $0x20] sm:$0x3f]
  %v28 = vld [vmem:[%s0 + $0x28] sm:$0x3f]
  %v29 = vlaneseq
  %v30 = vshrl.u32 %v29, 7
  %v31 = vxor.u32 %v11, 2147483648
  %v32 = vxor.u32 %v12, 2147483648
  %v33 = vxor.u32 %v13, 2147483648
  %v34 = vxor.u32 %v14, 2147483648
  %v35 = vxor.u32 %v15, 2147483648
  %v36 = vxor.u32 %v16, 2147483648
  %v37 = vxor.u32 %v17, 2147483648
  %v38 = vxor.u32 %v18, 2147483648
  %v39 = vxor.u32 %v19, 2147483648
  %v40 = vxor.u32 %v20, 2147483648
  %v41 = vxor.u32 %v21, 2147483648
  %v42 = vxor.u32 %v22, 2147483648
  %v43 = vmul.f32 %v31, 1.442695
  %v44 = vpow.pop %v43
  %v45 = vmul.f32 %v32, 1.442695
  %v46 = vpow.pop %v45
  %v47 = vmul.f32 %v33, 1.442695
  %v48 = vpow.pop %v47
  %v49 = vmul.f32 %v34, 1.442695
  %v50 = vpow.pop %v49
  %v51 = vmul.f32 %v35, 1.442695
  %v52 = vpow.pop %v51
  %v53 = vmul.f32 %v36, 1.442695
  %v54 = vpow.pop %v53
  %v55 = vmul.f32 %v37, 1.442695
  %v56 = vpow.pop %v55
  %v57 = vmul.f32 %v38, 1.442695
  %v58 = vpow.pop %v57
  %v59 = vmul.f32 %v39, 1.442695
  %v60 = vpow.pop %v59
  %v61 = vmul.f32 %v40, 1.442695
  %v62 = vpow.pop %v61
  %v63 = vmul.f32 %v41, 1.442695
  %v64 = vpow.pop %v63
  %v65 = vmul.f32 %v42, 1.442695
  %v66 = vpow.pop %v65
  %v67 = vadd.f32 %v44, 1.0
  %v68 = vadd.f32 %v46, 1.0
  %v69 = vadd.f32 %v48, 1.0
  %v70 = vadd.f32 %v50, 1.0
  %v71 = vadd.f32 %v52, 1.0
  %v72 = vadd.f32 %v54, 1.0
  %v73 = vadd.f32 %v56, 1.0
  %v74 = vadd.f32 %v58, 1.0
  %v75 = vadd.f32 %v60, 1.0
  %v76 = vadd.f32 %v62, 1.0
  %v77 = vadd.f32 %v64, 1.0
  %v78 = vadd.f32 %v66, 1.0
  %v79 = vrcp.pop %v67
  %v80 = vmul.f32 1.0, %v79
  %v81 = vrcp.pop %v68
  %v82 = vmul.f32 1.0, %v81
  %v83 = vrcp.pop %v69
  %v84 = vmul.f32 1.0, %v83
  %v85 = vrcp.pop %v70
  %v86 = vmul.f32 1.0, %v85
  %v87 = vrcp.pop %v71
  %v88 = vmul.f32 1.0, %v87
  %v89 = vrcp.pop %v72
  %v90 = vmul.f32 1.0, %v89
  %v91 = vrcp.pop %v73
  %v92 = vmul.f32 1.0, %v91
  %v93 = vrcp.pop %v74
  %v94 = vmul.f32 1.0, %v93
  %v95 = vrcp.pop %v75
  %v96 = vmul.f32 1.0, %v95
  %v97 = vrcp.pop %v76
  %v98 = vmul.f32 1.0, %v97
  %v99 = vrcp.pop %v77
  %v100 = vmul.f32 1.0, %v99
  %v101 = vrcp.pop %v78
  %v102 = vmul.f32 1.0, %v101
  %v103 = vadd.f32 %v80, %v23
  %v104 = vadd.f32 %v82, %v24
  %v105 = vadd.f32 %v84, %v25
  %v106 = vadd.f32 %v86, %v26
  %v107 = vadd.f32 %v88, %v27
  %v108 = vadd.f32 %v90, %v28
  %v109 = vadd.f32 %v92, %v23
  %v110 = vadd.f32 %v94, %v24
  %v111 = vadd.f32 %v96, %v25
  %v112 = vadd.f32 %v98, %v26
  %v113 = vadd.f32 %v100, %v27
  %v114 = vadd.f32 %v102, %v28
  %v115 = vmul.f32 %v103, 16.0
  %v116 = vmul.f32 %v104, 16.0
  %v117 = vmul.f32 %v105, 16.0
  %v118 = vmul.f32 %v106, 16.0
  %v119 = vmul.f32 %v107, 16.0
  %v120 = vmul.f32 %v108, 16.0
  %v121 = vmul.f32 %v109, 16.0
  %v122 = vmul.f32 %v110, 16.0
  %v123 = vmul.f32 %v111, 16.0
  %v124 = vmul.f32 %v112, 16.0
  %v125 = vmul.f32 %v113, 16.0
  %v126 = vmul.f32 %v114, 16.0
  %v127 = vmul.f32 %v11, 1.442695
  %v128 = vpow.pop %v127
  %v129 = vmul.f32 %v12, 1.442695
  %v130 = vpow.pop %v129
  %v131 = vmul.f32 %v13, 1.442695
  %v132 = vpow.pop %v131
  %v133 = vmul.f32 %v14, 1.442695
  %v134 = vpow.pop %v133
  %v135 = vmul.f32 %v15, 1.442695
  %v136 = vpow.pop %v135
  %v137 = vmul.f32 %v16, 1.442695
  %v138 = vpow.pop %v137
  %v139 = vmul.f32 %v17, 1.442695
  %v140 = vpow.pop %v139
  %v141 = vmul.f32 %v18, 1.442695
  %v142 = vpow.pop %v141
  %v143 = vmul.f32 %v19, 1.442695
  %v144 = vpow.pop %v143
  %v145 = vmul.f32 %v20, 1.442695
  %v146 = vpow.pop %v145
  %v147 = vmul.f32 %v21, 1.442695
  %v148 = vpow.pop %v147
  %v149 = vmul.f32 %v22, 1.442695
  %v150 = vpow.pop %v149
  %v151 = vmul.f32 %v128, %v23
  %v152 = vmul.f32 %v130, %v24
  %v153 = vmul.f32 %v132, %v25
  %v154 = vmul.f32 %v134, %v26
  %v155 = vmul.f32 %v136, %v27
  %v156 = vmul.f32 %v138, %v28
  %v157 = vmul.f32 %v140, %v23
  %v158 = vmul.f32 %v142, %v24
  %v159 = vmul.f32 %v144, %v25
  %v160 = vmul.f32 %v146, %v26
  %v161 = vmul.f32 %v148, %v27
  %v162 = vmul.f32 %v150, %v28
  %vm163 = vcmp.lt.s32.totalorder %v30, 2
  %vm164 = vcmp.lt.s32.totalorder %v30, 4
  %v165 = vsel %vm164, %v151, %v80
  %v166 = vsel %vm164, %v152, %v82
  %v167 = vsel %vm164, %v153, %v84
  %v168 = vsel %vm164, %v154, %v86
  %v169 = vsel %vm164, %v155, %v88
  %v170 = vsel %vm164, %v156, %v90
  %v171 = vsel %vm164, %v157, %v92
  %v172 = vsel %vm164, %v158, %v94
  %v173 = vsel %vm164, %v159, %v96
  %v174 = vsel %vm164, %v160, %v98
  %v175 = vsel %vm164, %v161, %v100
  %v176 = vsel %vm164, %v162, %v102
  %v177 = vsel %vm163, %v115, %v165
  %v178 = vsel %vm163, %v116, %v166
  %v179 = vsel %vm163, %v117, %v167
  %v180 = vsel %vm163, %v118, %v168
  %v181 = vsel %vm163, %v119, %v169
  %v182 = vsel %vm163, %v120, %v170
  %v183 = vsel %vm163, %v121, %v171
  %v184 = vsel %vm163, %v122, %v172
  %v185 = vsel %vm163, %v123, %v173
  %v186 = vsel %vm163, %v124, %v174
  %v187 = vsel %vm163, %v125, %v175
  %v188 = vsel %vm163, %v126, %v176
  %189 = vst [vmem:[%s2] sm:$0x3f] %v177
  %190 = vst [vmem:[%s2 + $0x8] sm:$0x3f] %v178
  %191 = vst [vmem:[%s2 + $0x10] sm:$0x3f] %v179
  %192 = vst [vmem:[%s2 + $0x18] sm:$0x3f] %v180
  %193 = vst [vmem:[%s2 + $0x20] sm:$0x3f] %v181
  %194 = vst [vmem:[%s2 + $0x28] sm:$0x3f] %v182
  %195 = vst [vmem:[%s2 + $0x30] sm:$0x3f] %v183
  %196 = vst [vmem:[%s2 + $0x38] sm:$0x3f] %v184
  %197 = vst [vmem:[%s2 + $0x40] sm:$0x3f] %v185
  %198 = vst [vmem:[%s2 + $0x48] sm:$0x3f] %v186
  %199 = vst [vmem:[%s2 + $0x50] sm:$0x3f] %v187
  %200 = vst [vmem:[%s2 + $0x58] sm:$0x3f] %v188
  // Predicated region
  $region10: #{tpu_custom_call.1} parent=0 // pred_check
    _
  $region11: #{tpu_custom_call.1} parent=0 // pred_check_branch
    %202 = sbr.rel (0) target = $region13
  $region12: #{tpu_custom_call.1} parent=0 // pred_region
    _
  $region13: #{tpu_custom_call.1} parent=0 // pred_fallthru
    _
  // Predicated region
  $region14: #{tpu_custom_call.1} parent=0 // pred_check
    _
  $region15: #{tpu_custom_call.1} parent=0 // pred_check_branch
    %204 = sbr.rel (0) target = $region17
  $region16: #{tpu_custom_call.1} parent=0 // pred_region
    _
  $region17: #{tpu_custom_call.1} parent=0 // pred_fallthru
    _

</llo_original>
